<compile_context>
chip_gen: v5e
topology: v5e:2x2
jax: 0.10.0
libtpu: 0.0.40
codegen_flags: <defaults>
</compile_context>

<pallas_src>
import numpy as np
import jax
import jax.numpy as jnp
from jax.experimental import pallas as pl
from jax.experimental.pallas import tpu as pltpu

# ---- UpsampleLayer(in_dim=IN_DIM, out_dim=OUT_DIM, ratio=RATIO) constructor config ----
IN_DIM = 4
OUT_DIM = 8
RATIO = 2                      # ratio > 1 -> ConvTranspose1d path
KSIZE = 2 * RATIO              # kernel size
STRIDE = RATIO
PAD = RATIO // 2
NEG_SLOPE = 0.2                # LeakyReLU(0.2)


def _pick_t_tile(T):
    # Largest lane-aligned tile that divides T; capped at 512 so that a double-buffered
    # (Cin, TT) input + (RATIO*Cout, TT) output comfortably fit v7x's 64 MiB VMEM even
    # for wide-channel RAVE layers.  Small / irregular T -> single whole-T tile.
    for tt in (512, 256, 128):
        if T % tt == 0:
            return tt
    return T


def _pack_weight_bias(weight, bias):
    """Pack ConvTranspose1d weight (Cin, Cout, K) + bias into (RATIO*Cout, 3*Cin + 1).

    Column blocks correspond to the stacked kernel input [x_prev; x; x_next; ones]:
      [0:Cin)      tap k = STRIDE + r + PAD   (uses x[q-1]);  zero if r+PAD >= STRIDE
      [Cin:2Cin)   tap k = r + PAD            (uses x[q])
      [2Cin:3Cin)  tap k = r + PAD - STRIDE   (uses x[q+1]);  zero if r+PAD <  STRIDE
      [3Cin]       bias (multiplied by the ones row)
    Row r*Cout + co is output phase r, channel co.
    """
    Cin, Cout, _ = weight.shape
    rows = []
    for r in range(RATIO):
        w_cur = weight[:, :, r + PAD].T                       # (Cout, Cin), d = 0
        if r + PAD < STRIDE:
            w_prev = weight[:, :, STRIDE + r + PAD].T         # d = +1 -> x[q-1]
            w_next = jnp.zeros((Cout, Cin), weight.dtype)
        else:
            w_prev = jnp.zeros((Cout, Cin), weight.dtype)
            w_next = weight[:, :, r + PAD - STRIDE].T         # d = -1 -> x[q+1]
        rows.append(jnp.concatenate([w_prev, w_cur, w_next, bias[:, None]], axis=1))
    return jnp.concatenate(rows, axis=0).astype(jnp.float32)  # (RATIO*Cout, 3*Cin+1)


def upsample_kernel(x_ref, xprev_ref, xnext_ref, w_ref, o_ref):
    # x_ref     : (Cin, TT)            current time tile, time on lanes
    # xprev_ref : (Cin, TT)            time tile t-1 (clamped at t == 0)
    # xnext_ref : (Cin, TT)            time tile t+1 (clamped at t == NT-1)
    # w_ref     : (RATIO*Cout, 3*Cin+1) packed taps + bias
    # o_ref     : (RATIO*Cout, TT)     row r*Cout + co = phase r, channel co
    Cin, TT = x_ref.shape
    t = pl.program_id(1)
    nt = pl.num_programs(1)

    def lrelu(v):
        return jnp.where(v >= 0, v, NEG_SLOPE * v)            # LeakyReLU(0.2) fused

    x = lrelu(x_ref[...])
    lane = jax.lax.broadcasted_iota(jnp.int32, (Cin, TT), 1)

    # x[q-1]: lane-roll right by 1; lane 0 comes from the previous tile's last column
    # (zero at the global left edge -- ConvTranspose1d zero padding).
    left_ok = (t > 0).astype(x.dtype)
    prev_col = lrelu(xprev_ref[:, TT - 1:TT]) * left_ok       # (Cin, 1)
    x_prev = jnp.where(lane == 0, prev_col, pltpu.roll(x, 1, axis=1))

    # x[q+1]: lane-roll left by 1; last lane comes from the next tile's first column
    # (zero at the global right edge).
    right_ok = (t < nt - 1).astype(x.dtype)
    next_col = lrelu(xnext_ref[:, 0:1]) * right_ok            # (Cin, 1)
    x_next = jnp.where(lane == TT - 1, next_col, pltpu.roll(x, TT - 1, axis=1))

    ones = jnp.ones((1, TT), x.dtype)
    xs = jnp.concatenate([x_prev, x, x_next, ones], axis=0)   # (3*Cin+1, TT)

    # Single packed MXU matmul: all phases, all taps and the bias at once.
    o_ref[...] = jnp.dot(w_ref[...], xs,
                         preferred_element_type=jnp.float32).astype(o_ref.dtype)


def upsample_layer(x_ncl, weight, bias, t_tile=None):
    """Forward pass of UpsampleLayer.

    x_ncl  : (B, Cin, T)         float32, PyTorch NCL layout (used as-is, no transpose)
    weight : (Cin, Cout, K)      ConvTranspose1d weight (PyTorch layout)
    bias   : (Cout,)
    returns: (B, Cout, T*RATIO)  NCL layout
    """
    B, Cin, T = x_ncl.shape
    Cout = weight.shape[1]
    TT = _pick_t_tile(T) if t_tile is None else t_tile
    assert T % TT == 0, (T, TT)
    NT = T // TT

    w_pack = _pack_weight_bias(weight, bias)                  # (RATIO*Cout, 3*Cin+1)

    out = pl.pallas_call(
        upsample_kernel,
        out_shape=jax.ShapeDtypeStruct((B, RATIO * Cout, T), x_ncl.dtype),
        grid_spec=pltpu.PrefetchScalarGridSpec(
            num_scalar_prefetch=0,
            grid=(B, NT),
            in_specs=[
                pl.BlockSpec((None, Cin, TT), lambda b, t: (b, 0, t)),
                pl.BlockSpec((None, Cin, TT),
                             lambda b, t: (b, 0, jnp.maximum(t - 1, 0))),
                pl.BlockSpec((None, Cin, TT),
                             lambda b, t: (b, 0, jnp.minimum(t + 1, NT - 1))),
                pl.BlockSpec((RATIO * Cout, 3 * Cin + 1), lambda b, t: (0, 0)),
            ],
            out_specs=pl.BlockSpec((None, RATIO * Cout, TT), lambda b, t: (b, 0, t)),
        ),
        compiler_params=pltpu.CompilerParams(
            dimension_semantics=("parallel", "parallel")),
    )(x_ncl, x_ncl, x_ncl, w_pack)

    # Phase de-interleave to NCL: (B, RATIO, Cout, T) -> (B, Cout, T, RATIO) -> (B, Cout, T*RATIO)
    out = out.reshape(B, RATIO, Cout, T)
    out = jnp.transpose(out, (0, 2, 3, 1)).reshape(B, Cout, T * RATIO)
    return out


def reference_numpy(x, w, b):
    """Direct NCL reference: LeakyReLU(0.2) -> ConvTranspose1d(K=2r, stride=r, pad=r//2)."""
    x = np.where(x >= 0, x, NEG_SLOPE * x)
    B, Cin, T = x.shape
    Cout = w.shape[1]
    Tout = (T - 1) * STRIDE - 2 * PAD + KSIZE
    y = np.zeros((B, Cout, Tout), np.float32)
    for bb in range(B):
        for t in range(T):
            for k in range(KSIZE):
                to = t * STRIDE - PAD + k
                if 0 <= to < Tout:
                    y[bb, :, to] += x[bb, :, t] @ w[:, :, k]
    y += b[None, :, None]
    return y


if __name__ == "__main__":
    key = jax.random.PRNGKey(0)
    k1, k2, k3 = jax.random.split(key, 3)

    B, T = 2, 16
    x = jax.random.normal(k1, (B, IN_DIM, T), jnp.float32)

    # Deterministic synthetic parameters (ConvTranspose1d: weight (Cin, Cout, K), bias (Cout,))
    fan = IN_DIM * KSIZE
    w = jax.random.normal(k2, (IN_DIM, OUT_DIM, KSIZE), jnp.float32) / np.sqrt(fan)
    b = jax.random.normal(k3, (OUT_DIM,), jnp.float32) * 0.1

    y = jax.block_until_ready(upsample_layer(x, w, b))
    y_ref = reference_numpy(np.asarray(x), np.asarray(w), np.asarray(b))
    assert y.shape == (B, OUT_DIM, T * RATIO), y.shape
    np.testing.assert_allclose(np.asarray(y), y_ref, rtol=1e-5, atol=1e-5)

    # Multi-tile check: T=256 split into two 128-lane time tiles (exercises the
    # cross-tile halo columns and the 2-D parallel grid).
    T2 = 256
    x2 = jax.random.normal(jax.random.PRNGKey(1), (B, IN_DIM, T2), jnp.float32)
    y2 = jax.block_until_ready(upsample_layer(x2, w, b, t_tile=128))
    y2_ref = reference_numpy(np.asarray(x2), np.asarray(w), np.asarray(b))
    assert y2.shape == (B, OUT_DIM, T2 * RATIO), y2.shape
    np.testing.assert_allclose(np.asarray(y2), y2_ref, rtol=1e-5, atol=1e-5)

    print("KERNEL_OK")
</pallas_src>

<mosaic_0001>
module attributes {stable_mosaic.version = 11 : i64} {
  func.func @upsample_kernel(%arg0: i32, %arg1: i32, %arg2: memref<1x4x16xf32, #tpu.memory_space<vmem>>, %arg3: memref<1x4x16xf32, #tpu.memory_space<vmem>>, %arg4: memref<1x4x16xf32, #tpu.memory_space<vmem>>, %arg5: memref<16x13xf32, #tpu.memory_space<vmem>>, %arg6: memref<1x16x16xf32, #tpu.memory_space<vmem>>) attributes {dimension_semantics = [#tpu.dimension_semantics<parallel>, #tpu.dimension_semantics<parallel>], iteration_bounds = array<i64: 2, 1>, scalar_prefetch = 0 : i64, scratch_operands = 0 : i64, tpu.core_type = #tpu.core_type<tc>, window_params = [{transform_indices = @transform_0, window_bounds = array<i64: 1, 4, 16>}, {transform_indices = @transform_1, window_bounds = array<i64: 1, 4, 16>}, {transform_indices = @transform_2, window_bounds = array<i64: 1, 4, 16>}, {pipeline_mode = #tpu.pipeline_mode<synchronous>, transform_indices = @transform_3, window_bounds = array<i64: 16, 13>}, {transform_indices = @transform_4, window_bounds = array<i64: 1, 16, 16>}]} {
    %c0 = arith.constant 0 : index
    %c0_0 = arith.constant 0 : index
    %c0_1 = arith.constant 0 : index
    %0 = vector.load %arg2[%c0, %c0_0, %c0_1] : memref<1x4x16xf32, #tpu.memory_space<vmem>>, vector<1x4x16xf32>
    %1 = vector.shape_cast %0 : vector<1x4x16xf32> to vector<4x16xf32>
    %cst = arith.constant 0.000000e+00 : f32
    %2 = vector.broadcast %cst : f32 to vector<4x16xf32>
    %3 = arith.cmpf oge, %1, %2 : vector<4x16xf32>
    %cst_2 = arith.constant 2.000000e-01 : f32
    %4 = vector.broadcast %cst_2 : f32 to vector<4x16xf32>
    %5 = arith.mulf %4, %1 : vector<4x16xf32>
    %6 = arith.select %3, %1, %5 : vector<4x16xi1>, vector<4x16xf32>
    %7 = tpu.iota {dimensions = array<i32: 1>} : vector<4x16xi32>
    %c0_i32 = arith.constant 0 : i32
    %8 = arith.cmpi sgt, %arg1, %c0_i32 : i32
    %9 = arith.extui %8 : i1 to i32
    %10 = arith.sitofp %9 : i32 to f32
    %c0_3 = arith.constant 0 : index
    %c0_4 = arith.constant 0 : index
    %c15 = arith.constant 15 : index
    %11 = vector.load %arg3[%c0_3, %c0_4, %c15] : memref<1x4x16xf32, #tpu.memory_space<vmem>>, vector<1x4x1xf32>
    %12 = vector.shape_cast %11 : vector<1x4x1xf32> to vector<4x1xf32>
    %cst_5 = arith.constant 0.000000e+00 : f32
    %13 = vector.broadcast %cst_5 : f32 to vector<4x1xf32>
    %14 = arith.cmpf oge, %12, %13 : vector<4x1xf32>
    %cst_6 = arith.constant 2.000000e-01 : f32
    %15 = vector.broadcast %cst_6 : f32 to vector<4x1xf32>
    %16 = arith.mulf %15, %12 : vector<4x1xf32>
    %17 = arith.select %14, %12, %16 : vector<4x1xi1>, vector<4x1xf32>
    %18 = vector.broadcast %10 : f32 to vector<4x1xf32>
    %19 = arith.mulf %17, %18 : vector<4x1xf32>
    %c0_i32_7 = arith.constant 0 : i32
    %20 = vector.broadcast %c0_i32_7 : i32 to vector<4x16xi32>
    %21 = arith.cmpi eq, %7, %20 : vector<4x16xi32>
    %c1_i32 = arith.constant 1 : i32
    %22 = tpu.dynamic_rotate %6 by %c1_i32 dim 1 : vector<4x16xf32>, i32 -> vector<4x16xf32>
    %23 = vector.shape_cast %19 : vector<4x1xf32> to vector<4x1xf32>
    %24 = vector.broadcast %23 : vector<4x1xf32> to vector<4x16xf32>
    %25 = arith.select %21, %24, %22 : vector<4x16xi1>, vector<4x16xf32>
    %c0_i32_8 = arith.constant 0 : i32
    %26 = arith.cmpi slt, %arg1, %c0_i32_8 : i32
    %27 = arith.extui %26 : i1 to i32
    %28 = arith.sitofp %27 : i32 to f32
    %c0_9 = arith.constant 0 : index
    %c0_10 = arith.constant 0 : index
    %c0_11 = arith.constant 0 : index
    %29 = vector.load %arg4[%c0_9, %c0_10, %c0_11] : memref<1x4x16xf32, #tpu.memory_space<vmem>>, vector<1x4x1xf32>
    %30 = vector.shape_cast %29 : vector<1x4x1xf32> to vector<4x1xf32>
    %cst_12 = arith.constant 0.000000e+00 : f32
    %31 = vector.broadcast %cst_12 : f32 to vector<4x1xf32>
    %32 = arith.cmpf oge, %30, %31 : vector<4x1xf32>
    %cst_13 = arith.constant 2.000000e-01 : f32
    %33 = vector.broadcast %cst_13 : f32 to vector<4x1xf32>
    %34 = arith.mulf %33, %30 : vector<4x1xf32>
    %35 = arith.select %32, %30, %34 : vector<4x1xi1>, vector<4x1xf32>
    %36 = vector.broadcast %28 : f32 to vector<4x1xf32>
    %37 = arith.mulf %35, %36 : vector<4x1xf32>
    %c15_i32 = arith.constant 15 : i32
    %38 = vector.broadcast %c15_i32 : i32 to vector<4x16xi32>
    %39 = arith.cmpi eq, %7, %38 : vector<4x16xi32>
    %c15_i32_14 = arith.constant 15 : i32
    %40 = tpu.dynamic_rotate %6 by %c15_i32_14 dim 1 : vector<4x16xf32>, i32 -> vector<4x16xf32>
    %41 = vector.shape_cast %37 : vector<4x1xf32> to vector<4x1xf32>
    %42 = vector.broadcast %41 : vector<4x1xf32> to vector<4x16xf32>
    %43 = arith.select %39, %42, %40 : vector<4x16xi1>, vector<4x16xf32>
    %cst_15 = arith.constant 1.000000e+00 : f32
    %44 = vector.broadcast %cst_15 : f32 to vector<1x16xf32>
    %45 = tpu.concatenate %25, %6, %43, %44 in 0 : vector<4x16xf32>, vector<4x16xf32>, vector<4x16xf32>, vector<1x16xf32> -> vector<13x16xf32>
    %c0_16 = arith.constant 0 : index
    %c0_17 = arith.constant 0 : index
    %46 = vector.load %arg5[%c0_16, %c0_17] : memref<16x13xf32, #tpu.memory_space<vmem>>, vector<16x13xf32>
    %cst_18 = arith.constant dense<0.000000e+00> : vector<16x16xf32>
    %47 = tpu.matmul %46, %45, %cst_18 {dimension_numbers = #tpu.dot_dimension_numbers<[1], [0], [0], [1], [0, 0, 1, 1], [], []>} : vector<16x13xf32>, vector<13x16xf32>, vector<16x16xf32> -> vector<16x16xf32>
    %c0_19 = arith.constant 0 : index
    %c0_20 = arith.constant 0 : index
    %c0_21 = arith.constant 0 : index
    %48 = vector.load %arg6[%c0_19, %c0_20, %c0_21] : memref<1x16x16xf32, #tpu.memory_space<vmem>>, vector<1x16x16xf32>
    %49 = vector.shape_cast %48 : vector<1x16x16xf32> to vector<16x16xf32>
    %50 = vector.shape_cast %47 : vector<16x16xf32> to vector<1x16x16xf32>
    tpu.vector_store %arg6[%c0_19, %c0_20, %c0_21], %50 {strides = array<i32>} : memref<1x16x16xf32, #tpu.memory_space<vmem>>, vector<1x16x16xf32>,
    return
  }
  func.func @transform_0(%arg0: i32, %arg1: i32) -> (i32, i32, i32) {
    %c0_i32 = arith.constant 0 : i32
    %c0_i32_0 = arith.constant 0 : i32
    return %arg0, %c0_i32, %arg1 : i32, i32, i32
  }
  func.func @transform_1(%arg0: i32, %arg1: i32) -> (i32, i32, i32) {
    %c1_i32 = arith.constant 1 : i32
    %0 = arith.subi %arg1, %c1_i32 : i32
    %c0_i32 = arith.constant 0 : i32
    %1 = arith.maxsi %0, %c0_i32 : i32
    %c0_i32_0 = arith.constant 0 : i32
    %c0_i32_1 = arith.constant 0 : i32
    return %arg0, %c0_i32_0, %1 : i32, i32, i32
  }
  func.func @transform_2(%arg0: i32, %arg1: i32) -> (i32, i32, i32) {
    %c1_i32 = arith.constant 1 : i32
    %0 = arith.addi %arg1, %c1_i32 : i32
    %c0_i32 = arith.constant 0 : i32
    %1 = arith.minsi %0, %c0_i32 : i32
    %c0_i32_0 = arith.constant 0 : i32
    %c0_i32_1 = arith.constant 0 : i32
    return %arg0, %c0_i32_0, %1 : i32, i32, i32
  }
  func.func @transform_3(%arg0: i32, %arg1: i32) -> (i32, i32) {
    %c0_i32 = arith.constant 0 : i32
    %c0_i32_0 = arith.constant 0 : i32
    %c0_i32_1 = arith.constant 0 : i32
    return %c0_i32, %c0_i32_0 : i32, i32
  }
  func.func @transform_4(%arg0: i32, %arg1: i32) -> (i32, i32, i32) {
    %c0_i32 = arith.constant 0 : i32
    %c0_i32_0 = arith.constant 0 : i32
    return %arg0, %c0_i32, %arg1 : i32, i32, i32
  }
}

</mosaic_0001>

<llo_original>
// kernel: tpu_custom_call.1
$region0: #{tpu_custom_call.1}
  #allocation0 [shape = 'u32[]', space=smem, size = 0x4, offset = 0x4, fixed_abs, tag = 'smem constant byte address 0x4 - core index']
  #allocation1 [shape = 'u32[72,128]{1,0:T(1,128)}', space=vmem, size = 0x9000, scoped, tag = 'internal scratch']
  %s0 = inlined_call_operand.hbm [shape: f32[2,4,16], index: 0, kind: input, shape index: {}]
  %s1 = inlined_call_operand.hbm [shape: f32[2,4,16], index: 1, kind: input, shape index: {}]
  %s2 = inlined_call_operand.hbm [shape: f32[2,4,16], index: 2, kind: input, shape index: {}]
  %s3 = inlined_call_operand.hbm [shape: f32[16,13], index: 3, kind: input, shape index: {}]
  %s4 = inlined_call_operand.hbm [shape: f32[2,16,16], index: 4, kind: output, shape index: {}]
  %s5 = sld [smem:[#allocation0]]
  $region65: #{tpu_custom_call.1} parent=0
    _
  %s7 = ssub.s32 1, %s5
  %s8 = scalar_select 0, %s7, %s5
  $region1: #{tpu_custom_call.1} parent=0
    #allocation2 [shape = 'u8[4096]{0}', space=vmem, size = 0x1000, scoped, tag = 'input window, operand 0']
    #allocation3 [shape = 's32[2]{0}', space=sflag, size = 0x8, scoped, tag = 'scoped memory for tpu_custom_call.1']
    #allocation4 [shape = 's32[2]{0}', space=sflag, size = 0x8, scoped, tag = 'scoped memory for tpu_custom_call.1']
    #allocation5 [shape = 'u8[4096]{0}', space=vmem, size = 0x1000, scoped, tag = 'input window, operand 1']
    #allocation6 [shape = 's32[2]{0}', space=sflag, size = 0x8, scoped, tag = 'scoped memory for tpu_custom_call.1']
    #allocation7 [shape = 'u8[4096]{0}', space=vmem, size = 0x1000, scoped, tag = 'input window, operand 2']
    #allocation8 [shape = 'u8[8192]{0}', space=vmem, size = 0x2000, scoped, tag = 'input window, operand 3, single buffered']
    #allocation9 [shape = 's32[1]{0}', space=sflag, size = 0x4, scoped, tag = 'scoped memory for tpu_custom_call.1']
    #allocation10 [shape = 'u8[16384]{0}', space=vmem, size = 0x4000, scoped, tag = 'output window, operand 0']
    %9 = vsyncpa [#allocation3], 0
    %s10 = scalar_lea.sflag [#allocation3], 1
    %11 = vsyncpa %s10, 0
    %12 = vsyncpa [#allocation6], 0
    %s13 = scalar_lea.sflag [#allocation6], 1
    %14 = vsyncpa %s13, 0
    %15 = vsyncpa [#allocation9], 0
    %16 = vsyncpa [#allocation4], 0
    %s17 = scalar_lea.sflag [#allocation4], 1
    %18 = vsyncpa %s17, 0
    loop: start=0, step=1, limit=4
    $region2: #{tpu_custom_call.1} parent=1 // loop_pre_header
      _
    $region3: #{tpu_custom_call.1} parent=1 // loop_header
      %s20 = sphi 0, %s24
      %p21 = scmp.ge.s32.totalorder %s20, 4
      %s27 = sphi 0, %s39
      %s28 = sphi 0, %s35
      %s29 = sphi 0, %s27
      %s30 = sphi 0, %s28
      %s31 = sphi 0, %s29
      %s32 = sphi 0, %s30
      %s44 = sphi 0, %s46
      %s47 = sphi 0, %s44
      %s48 = sphi 0, %s47
      %s64 = sphi 0, %s48
      %s78 = sphi 0, %s80
      %s81 = sphi 0, %s78
      %s82 = sphi 0, %s81
      %s98 = sphi 0, %s82
      %s112 = sphi 0, %s114
      %s115 = sphi 0, %s112
      %s116 = sphi 0, %s115
      %s132 = sphi 0, %s116
      %s136 = sphi 0, %s136
      %s138 = sphi 0, %s136
      %s139 = sphi 0, %s138
      %s153 = sphi 0, %s139
      %s161 = sphi 0, %s163
      %s164 = sphi 0, %s161
      %s165 = sphi 0, %s164
      %s181 = sphi 0, %s165
    $region4: #{tpu_custom_call.1} parent=1 // loop_header_branch
      %23 = sbr.rel (%p21) target = $region8
    $region5: #{tpu_custom_call.1} parent=1 // loop_body
      %s25 = ssub.s32 %s20, 1
      %s26 = ssub.s32 %s20, 2
      %s33 = sadd.s32 1, %s28
      %p34 = scmp.ge.s32.totalorder %s33, 1
      %s35 = scalar_select %p34, 0, %s33
      %s36 = sadd.s32 1, %s27
      %s37 = scalar_select %p34, %s36, %s27
      %p38 = scmp.ge.s32.totalorder %s37, 2
      %s39 = scalar_select %p38, 0, %s37
      %s40 = ssub.s32 %s27, %s39
      %s41 = ssub.s32 %s28, %s35
      %s42 = sor.u32 %s40, %s41
      %p43 = scmp.eq.s32.totalorder %s42, 0
      %s45 = sadd.s32 %s44, 1
      %s46 = scalar_select %p43, %s44, %s45
      %p49 = pneg %p43
      %p50 = scmp.eq.s32.totalorder %s20, 1
      %p51 = por %p49, %p50
      %p52 = scmp.ne.s32.totalorder %s44, %s47
      %p53 = scmp.eq.s32.totalorder %s20, 0
      %p54 = por %p52, %p53
      %p55 = scmp.ne.s32.totalorder %s44, %s47
      %p56 = scmp.eq.s32.totalorder %s25, 1
      %p57 = por %p55, %p56
      %p58 = scmp.ne.s32.totalorder %s47, %s48
      %p59 = scmp.eq.s32.totalorder %s25, 0
      %p60 = por %p58, %p59
      %p61 = scmp.ne.s32.totalorder %s47, %s48
      %p62 = scmp.eq.s32.totalorder %s26, 1
      %p63 = por %p61, %p62
      %p65 = scmp.ne.s32.totalorder %s48, %s64
      %p66 = scmp.eq.s32.totalorder %s26, 0
      %p67 = por %p65, %p66
      %s68 = ssub.s32 %s28, 1
      %p69 = scmp.gt.s32.totalorder %s68, 0
      %s70 = scalar_select %p69, %s68, 0
      %s71 = ssub.s32 %s35, 1
      %p72 = scmp.gt.s32.totalorder %s71, 0
      %s73 = scalar_select %p72, %s71, 0
      %s74 = ssub.s32 %s27, %s39
      %s75 = ssub.s32 %s70, %s73
      %s76 = sor.u32 %s74, %s75
      %p77 = scmp.eq.s32.totalorder %s76, 0
      %s79 = sadd.s32 %s78, 1
      %s80 = scalar_select %p77, %s78, %s79
      %p83 = pneg %p77
      %p84 = scmp.eq.s32.totalorder %s20, 1
      %p85 = por %p83, %p84
      %p86 = scmp.ne.s32.totalorder %s78, %s81
      %p87 = scmp.eq.s32.totalorder %s20, 0
      %p88 = por %p86, %p87
      %p89 = scmp.ne.s32.totalorder %s78, %s81
      %p90 = scmp.eq.s32.totalorder %s25, 1
      %p91 = por %p89, %p90
      %p92 = scmp.ne.s32.totalorder %s81, %s82
      %p93 = scmp.eq.s32.totalorder %s25, 0
      %p94 = por %p92, %p93
      %p95 = scmp.ne.s32.totalorder %s81, %s82
      %p96 = scmp.eq.s32.totalorder %s26, 1
      %p97 = por %p95, %p96
      %p99 = scmp.ne.s32.totalorder %s82, %s98
      %p100 = scmp.eq.s32.totalorder %s26, 0
      %p101 = por %p99, %p100
      %s102 = sadd.s32 %s28, 1
      %p103 = scmp.lt.s32.totalorder %s102, 0
      %s104 = scalar_select %p103, %s102, 0
      %s105 = sadd.s32 %s35, 1
      %p106 = scmp.lt.s32.totalorder %s105, 0
      %s107 = scalar_select %p106, %s105, 0
      %s108 = ssub.s32 %s27, %s39
      %s109 = ssub.s32 %s104, %s107
      %s110 = sor.u32 %s108, %s109
      %p111 = scmp.eq.s32.totalorder %s110, 0
      %s113 = sadd.s32 %s112, 1
      %s114 = scalar_select %p111, %s112, %s113
      %p117 = pneg %p111
      %p118 = scmp.eq.s32.totalorder %s20, 1
      %p119 = por %p117, %p118
      %p120 = scmp.ne.s32.totalorder %s112, %s115
      %p121 = scmp.eq.s32.totalorder %s20, 0
      %p122 = por %p120, %p121
      %p123 = scmp.ne.s32.totalorder %s112, %s115
      %p124 = scmp.eq.s32.totalorder %s25, 1
      %p125 = por %p123, %p124
      %p126 = scmp.ne.s32.totalorder %s115, %s116
      %p127 = scmp.eq.s32.totalorder %s25, 0
      %p128 = por %p126, %p127
      %p129 = scmp.ne.s32.totalorder %s115, %s116
      %p130 = scmp.eq.s32.totalorder %s26, 1
      %p131 = por %p129, %p130
      %p133 = scmp.ne.s32.totalorder %s116, %s132
      %p134 = scmp.eq.s32.totalorder %s26, 0
      %p135 = por %p133, %p134
      %s137 = sadd.s32 %s136, 1
      %p140 = scmp.eq.s32.totalorder %s20, 1
      %p141 = scmp.ne.s32.totalorder %s136, %s138
      %p142 = scmp.eq.s32.totalorder %s20, 0
      %p143 = por %p141, %p142
      %p144 = scmp.ne.s32.totalorder %s136, %s138
      %p145 = scmp.eq.s32.totalorder %s25, 1
      %p146 = por %p144, %p145
      %p147 = scmp.ne.s32.totalorder %s138, %s139
      %p148 = scmp.eq.s32.totalorder %s25, 0
      %p149 = por %p147, %p148
      %p150 = scmp.ne.s32.totalorder %s138, %s139
      %p151 = scmp.eq.s32.totalorder %s26, 1
      %p152 = por %p150, %p151
      %p154 = scmp.ne.s32.totalorder %s139, %s153
      %p155 = scmp.eq.s32.totalorder %s26, 0
      %p156 = por %p154, %p155
      %s157 = ssub.s32 %s27, %s39
      %s158 = ssub.s32 %s28, %s35
      %s159 = sor.u32 %s157, %s158
      %p160 = scmp.eq.s32.totalorder %s159, 0
      %s162 = sadd.s32 %s161, 1
      %s163 = scalar_select %p160, %s161, %s162
      %p166 = pneg %p160
      %p167 = scmp.eq.s32.totalorder %s20, 1
      %p168 = por %p166, %p167
      %p169 = scmp.ne.s32.totalorder %s161, %s164
      %p170 = scmp.eq.s32.totalorder %s20, 0
      %p171 = por %p169, %p170
      %p172 = scmp.ne.s32.totalorder %s161, %s164
      %p173 = scmp.eq.s32.totalorder %s25, 1
      %p174 = por %p172, %p173
      %p175 = scmp.ne.s32.totalorder %s164, %s165
      %p176 = scmp.eq.s32.totalorder %s25, 0
      %p177 = por %p175, %p176
      %p178 = scmp.ne.s32.totalorder %s164, %s165
      %p179 = scmp.eq.s32.totalorder %s26, 1
      %p180 = por %p178, %p179
      %p182 = scmp.ne.s32.totalorder %s165, %s181
      %p183 = scmp.eq.s32.totalorder %s26, 0
      %p184 = por %p182, %p183
      %p185 = scmp.le.s32.totalorder 1, %s20
      %p186 = scmp.lt.s32.totalorder %s20, 3
      %p187 = pnand %p185, %p186
      %p188 = pneg %p187
      // Predicated region
      $region9: #{tpu_custom_call.1} parent=5 // pred_check
        _
      $region10: #{tpu_custom_call.1} parent=5 // pred_check_branch
        %190 = sbr.rel (%p187) target = $region12
      $region11: #{tpu_custom_call.1} parent=5 // pred_region
        %s191 = ssub.s32 %s20, 1
        // Predicated region
        $region13: #{tpu_custom_call.1} parent=11 // pred_check
          %p192 = pneg %p149
        $region14: #{tpu_custom_call.1} parent=11 // pred_check_branch
          %194 = sbr.rel (%p192) target = $region16
        $region15: #{tpu_custom_call.1} parent=11 // pred_region
          %196 = vsyncadd [#allocation9], 0
          %s197 = sshll.u32 %s3, 4
          %s198 = int_to_ptr.hbm [resolvable:$true] %s197
          %s199 = sshll.u32 [#allocation8], 4
          %s200 = int_to_ptr.vmem [resolvable:$true] %s199
          %205 = dma.hbm_to_vmem [thread:$0]  %s198, 256, %s200, [#allocation9], 128, 128, 8
        $region16: #{tpu_custom_call.1} parent=11 // pred_fallthru
          _
      $region12: #{tpu_custom_call.1} parent=5 // pred_fallthru
        _
      %p206 = scmp.lt.s32.totalorder %s20, 2
      // Predicated region
      $region17: #{tpu_custom_call.1} parent=5 // pred_check
        %p207 = pneg %p206
      $region18: #{tpu_custom_call.1} parent=5 // pred_check_branch
        %209 = sbr.rel (%p207) target = $region20
      $region19: #{tpu_custom_call.1} parent=5 // pred_region
        // Predicated region
        $region21: #{tpu_custom_call.1} parent=19 // pred_check
          %p210 = pneg %p54
        $region22: #{tpu_custom_call.1} parent=19 // pred_check_branch
          %212 = sbr.rel (%p210) target = $region24
        $region23: #{tpu_custom_call.1} parent=19 // pred_region
          %s213 = sand.u32 %s44, 1
          %s214 = scalar_lea.sflag [#allocation3], %s213
          %s215 = sand.u32 %s44, 1
          %s216 = smul.addr %s215, 4
          %s217 = scalar_lea.vmem [#allocation2], %s216
          %219 = vsyncadd %s214, 0
          %s220 = sadd.s32 %s28, %s27
          %s221 = smul.addr %s220, 4
          %s222 = scalar_lea.hbm %s0, %s221
          %s224 = sshll.u32 %s222, 4
          %s225 = int_to_ptr.hbm [resolvable:$true] %s224
          %s226 = sshll.u32 %s217, 4
          %s227 = int_to_ptr.vmem [resolvable:$true] %s226
          %229 = dma.hbm_to_vmem [thread:$0]  %s225, 64, %s227, %s214
        $region24: #{tpu_custom_call.1} parent=19 // pred_fallthru
          _
        // Predicated region
        $region25: #{tpu_custom_call.1} parent=19 // pred_check
          %p230 = pneg %p88
        $region26: #{tpu_custom_call.1} parent=19 // pred_check_branch
          %232 = sbr.rel (%p230) target = $region28
        $region27: #{tpu_custom_call.1} parent=19 // pred_region
          %s233 = sand.u32 %s20, 1
          %s234 = scalar_lea.sflag [#allocation6], %s233
          %s235 = sand.u32 %s78, 1
          %s236 = smul.addr %s235, 4
          %s237 = scalar_lea.vmem [#allocation5], %s236
          %s238 = ssub.s32 %s28, 1
          %p239 = scmp.gt.s32.totalorder %s238, 0
          %s240 = scalar_select %p239, %s238, 0
          %242 = vsyncadd %s234, 0
          %s243 = sadd.s32 %s240, %s27
          %s244 = smul.addr %s243, 4
          %s245 = scalar_lea.hbm %s1, %s244
          %s247 = sshll.u32 %s245, 4
          %s248 = int_to_ptr.hbm [resolvable:$true] %s247
          %s249 = sshll.u32 %s237, 4
          %s250 = int_to_ptr.vmem [resolvable:$true] %s249
          %252 = dma.hbm_to_vmem [thread:$0]  %s248, 64, %s250, %s234
        $region28: #{tpu_custom_call.1} parent=19 // pred_fallthru
          _
        // Predicated region
        $region29: #{tpu_custom_call.1} parent=19 // pred_check
          %p253 = pneg %p122
        $region30: #{tpu_custom_call.1} parent=19 // pred_check_branch
          %255 = sbr.rel (%p253) target = $region32
        $region31: #{tpu_custom_call.1} parent=19 // pred_region
          %s256 = sand.u32 %s20, 1
          %s257 = scalar_lea.sflag [#allocation6], %s256
          %s258 = sand.u32 %s112, 1
          %s259 = smul.addr %s258, 4
          %s260 = scalar_lea.vmem [#allocation7], %s259
          %s261 = sadd.s32 %s28, 1
          %p262 = scmp.lt.s32.totalorder %s261, 0
          %s263 = scalar_select %p262, %s261, 0
          %265 = vsyncadd %s257, 0
          %s266 = sadd.s32 %s263, %s27
          %s267 = smul.addr %s266, 4
          %s268 = scalar_lea.hbm %s2, %s267
          %s270 = sshll.u32 %s268, 4
          %s271 = int_to_ptr.hbm [resolvable:$true] %s270
          %s272 = sshll.u32 %s260, 4
          %s273 = int_to_ptr.vmem [resolvable:$true] %s272
          %275 = dma.hbm_to_vmem [thread:$0]  %s271, 64, %s273, %s257
        $region32: #{tpu_custom_call.1} parent=19 // pred_fallthru
          _
      $region20: #{tpu_custom_call.1} parent=5 // pred_fallthru
        _
      %p276 = scmp.le.s32.totalorder 1, %s20
      %p277 = scmp.lt.s32.totalorder %s20, 3
      %p278 = pnand %p276, %p277
      %p279 = pneg %p278
      // Predicated region
      $region33: #{tpu_custom_call.1} parent=5 // pred_check
        _
      $region34: #{tpu_custom_call.1} parent=5 // pred_check_branch
        %281 = sbr.rel (%p278) target = $region36
      $region35: #{tpu_custom_call.1} parent=5 // pred_region
        %s282 = ssub.s32 %s20, 1
        %s283 = sand.u32 %s47, 1
        %s284 = scalar_lea.sflag [#allocation3], %s283
        %s285 = sand.u32 %s47, 1
        %s286 = smul.addr %s285, 4
        %s287 = scalar_lea.vmem [#allocation2], %s286
        // Predicated region
        $region37: #{tpu_custom_call.1} parent=35 // pred_check
          %p288 = pneg %p60
        $region38: #{tpu_custom_call.1} parent=35 // pred_check_branch
          %290 = sbr.rel (%p288) target = $region40
        $region39: #{tpu_custom_call.1} parent=35 // pred_region
          %292 = dma.done %s284, 64
        $region40: #{tpu_custom_call.1} parent=35 // pred_fallthru
          _
        %s293 = sand.u32 %s25, 1
        %s294 = scalar_lea.sflag [#allocation6], %s293
        %s295 = sand.u32 %s81, 1
        %s296 = smul.addr %s295, 4
        %s297 = scalar_lea.vmem [#allocation5], %s296
        // Predicated region
        $region41: #{tpu_custom_call.1} parent=35 // pred_check
          %p298 = pneg %p94
        $region42: #{tpu_custom_call.1} parent=35 // pred_check_branch
          %300 = sbr.rel (%p298) target = $region44
        $region43: #{tpu_custom_call.1} parent=35 // pred_region
          %302 = dma.done %s294, 64
        $region44: #{tpu_custom_call.1} parent=35 // pred_fallthru
          _
        %s303 = sand.u32 %s25, 1
        %s304 = scalar_lea.sflag [#allocation6], %s303
        %s305 = sand.u32 %s115, 1
        %s306 = smul.addr %s305, 4
        %s307 = scalar_lea.vmem [#allocation7], %s306
        // Predicated region
        $region45: #{tpu_custom_call.1} parent=35 // pred_check
          %p308 = pneg %p128
        $region46: #{tpu_custom_call.1} parent=35 // pred_check_branch
          %310 = sbr.rel (%p308) target = $region48
        $region47: #{tpu_custom_call.1} parent=35 // pred_region
          %312 = dma.done %s304, 64
        $region48: #{tpu_custom_call.1} parent=35 // pred_fallthru
          _
        // Predicated region
        $region49: #{tpu_custom_call.1} parent=35 // pred_check
          %p313 = pneg %p149
        $region50: #{tpu_custom_call.1} parent=35 // pred_check_branch
          %315 = sbr.rel (%p313) target = $region52
        $region51: #{tpu_custom_call.1} parent=35 // pred_region
          %317 = dma.done [#allocation9], 256
        $region52: #{tpu_custom_call.1} parent=35 // pred_fallthru
          _
        %s318 = sand.u32 %s47, 1
        %s319 = scalar_lea.sflag [#allocation3], %s318
        %s320 = sand.u32 %s47, 1
        %s321 = smul.addr %s320, 4
        %s322 = scalar_lea.vmem [#allocation2], %s321
        %p323 = pneg %p60
        %p324 = pneg %p57
        %s325 = sand.u32 %s25, 1
        %s326 = scalar_lea.sflag [#allocation6], %s325
        %s327 = sand.u32 %s81, 1
        %s328 = smul.addr %s327, 4
        %s329 = scalar_lea.vmem [#allocation5], %s328
        %p330 = pneg %p94
        %p331 = pneg %p91
        %s332 = sand.u32 %s25, 1
        %s333 = scalar_lea.sflag [#allocation6], %s332
        %s334 = sand.u32 %s115, 1
        %s335 = smul.addr %s334, 4
        %s336 = scalar_lea.vmem [#allocation7], %s335
        %p337 = pneg %p128
        %p338 = pneg %p125
        %p339 = pneg %p149
        %p340 = pneg %p146
        %p341 = pneg %p177
        %p342 = pneg %p174
        %s343 = sand.u32 %s164, 1
        %s344 = scalar_lea.sflag [#allocation4], %s343
        %s345 = sand.u32 %s164, 1
        %s346 = smul.addr %s345, 16
        %s347 = scalar_lea.vmem [#allocation10], %s346
        %s348 = ssub.s32 %s30, 1
        %p349 = scmp.gt.s32.totalorder %s348, 0
        %s350 = scalar_select %p349, %s348, 0
        %s351 = sadd.s32 %s30, 1
        %p352 = scmp.lt.s32.totalorder %s351, 0
        %s353 = scalar_select %p352, %s351, 0
        %v354 = vld [vmem:[%s287] sm:$0xf]
        %vm355 = vcmp.ge.f32.partialorder %v354, 0.0
        %v356 = vmul.f32 %v354, 0.2
        %v357 = vsel %vm355, %v354, %v356
        %v358 = vlaneseq
        %v359 = vand.u32 %v358, 127
        %p360 = scmp.gt.s32.totalorder %s30, 0
        %s361 = scalar_select %p360, 1, 0
        %s362 = scvt.s32.f32 %s361
        %v363 = vld [vmem:[%s297] sm:$0xf]
        %vm364 = vcmp.ge.f32.partialorder %v363, 0.0
        %v365 = vmul.f32 %v363, 0.2
        %v366 = vsel %vm364, %v363, %v365
        %v367 = vstv %s362
        %v368 = vmul.f32 %v366, %v367
        %vm369 = vcmp.eq.s32.totalorder %v359, 0
        %vm370 = vcmask 1047680
        %371 = vrot.lane.b32.xlu0 %v357, 16
        %v372 = vpop.permute.xlu0 %371
        %v373 = vsel %vm370, %v372, %v357
        %374 = vrot.lane.b32.xlu0 %v373, 16
        %v375 = vpop.permute.xlu0 %374
        %v376 = vsel %vm370, %v375, %v357
        %378 = vset.pattern.permute.xlu0 15
        %379 = vperm.xlu0 %378, %v368
        %v380 = vpop.permute.xlu0 %379
        %383 = vrot.lane.b32.xlu0 %v376, 113
        %v384 = vpop.permute.xlu0 %383
        %v386 = vsel %vm369, %v380, %v384
        %p387 = scmp.lt.s32.totalorder %s30, 0
        %s388 = scalar_select %p387, 1, 0
        %s389 = scvt.s32.f32 %s388
        %v390 = vld [vmem:[%s307] sm:$0xf]
        %vm391 = vcmp.ge.f32.partialorder %v390, 0.0
        %v392 = vmul.f32 %v390, 0.2
        %v393 = vsel %vm391, %v390, %v392
        %v394 = vstv %s389
        %v395 = vmul.f32 %v393, %v394
        %vm396 = vcmp.eq.s32.totalorder %v359, 15
        %398 = vset.pattern.permute.xlu0 0
        %399 = vperm.xlu0 %398, %v395
        %v400 = vpop.permute.xlu0 %399
        %402 = vrot.lane.b32.xlu0 %v376, 127
        %v403 = vpop.permute.xlu0 %402
        %v405 = vsel %vm396, %v400, %v403
        %v407 = vrot.slane %v357, 4
        %vm409 = vcmask 1043456
        %v410 = vsel %vm409, %v386, %v407
        %v411 = vsel %vm409, %v405, 1.0
        %v412 = vld [vmem:[#allocation8] sm:$0xff]
        %v413 = vld [vmem:[#allocation8 + $0x8] sm:$0xff]
        %vm414 = vcmask 105472
        %v416 = vsel %vm414, %v412, 0
        %v419 = vsel %vm414, %v413, 0
        %vm421 = vcmask 1044480
        %v423 = vsel %vm421, %v411, 0
        %425 = vmatpush.msra.mxu0 0.0
        %426 = vmatpush.msra.mxu0 0.0
        %427 = vmatpush.msra.mxu0 0.0
        %428 = vmatpush.msra.mxu0 0.0
        %429 = vmatpush.msra.mxu0 0.0
        %430 = vmatpush.msra.mxu0 0.0
        %431 = vmatpush.msra.mxu0 0.0
        %432 = vmatpush.msra.mxu0 0.0
        %433 = vmatpush.msra.mxu0 0.0
        %434 = vmatpush.msra.mxu0 0.0
        %435 = vmatpush.msra.mxu0 0.0
        %436 = vmatpush.msra.mxu0 0.0
        %437 = vmatpush.msra.mxu0 0.0
        %438 = vmatpush.msra.mxu0 0.0
        %439 = vmatpush.msra.mxu0 %v423
        %440 = vmatpush.msra.mxu0 %v410
        %441 = vmatmul.f32.gmra.mxu0 %v416
        %v442 = vpop.f32.mrf.mxu0
        %v443 = vadd.f32 0.0, %v442
        %444 = vmatmul.f32.gmra.mxu0 %v419
        %v445 = vpop.f32.mrf.mxu0
        %v446 = vadd.f32 0.0, %v445
        %447 = vdwg.mxu0
        %vm448 = vcmask 130048
        %449 = vst.msk [vmem:[%s347] sm:$0xff] %vm448, %v443
        %450 = vst.msk [vmem:[%s347 + $0x8] sm:$0xff] %vm448, %v446
        %s451 = sand.u32 %s164, 1
        %s452 = scalar_lea.sflag [#allocation4], %s451
        %s453 = sand.u32 %s164, 1
        %s454 = smul.addr %s453, 16
        %s455 = scalar_lea.vmem [#allocation10], %s454
        // Predicated region
        $region53: #{tpu_custom_call.1} parent=35 // pred_check
          %p456 = pneg %p174
        $region54: #{tpu_custom_call.1} parent=35 // pred_check_branch
          %458 = sbr.rel (%p456) target = $region56
        $region55: #{tpu_custom_call.1} parent=35 // pred_region
          %460 = vsyncadd %s452, 0
          %s461 = smul.addr %s29, 2
          %s462 = sadd.s32 %s30, %s461
          %s463 = smul.addr %s462, 8
          %s464 = scalar_lea.hbm %s4, %s463
          %s465 = sshll.u32 %s455, 4
          %s466 = int_to_ptr.vmem [resolvable:$true] %s465
          %s467 = sshll.u32 %s464, 4
          %s468 = int_to_ptr.hbm [resolvable:$true] %s467
          %473 = dma.vmem_to_hbm [thread:$0]  %s466, 256, %s468, %s452, 128, 128, 8
        $region56: #{tpu_custom_call.1} parent=35 // pred_fallthru
          _
      $region36: #{tpu_custom_call.1} parent=5 // pred_fallthru
        _
      %p474 = scmp.le.s32.totalorder 2, %s20
      // Predicated region
      $region57: #{tpu_custom_call.1} parent=5 // pred_check
        %p475 = pneg %p474
      $region58: #{tpu_custom_call.1} parent=5 // pred_check_branch
        %477 = sbr.rel (%p475) target = $region60
      $region59: #{tpu_custom_call.1} parent=5 // pred_region
        %s478 = ssub.s32 %s20, 2
        // Predicated region
        $region61: #{tpu_custom_call.1} parent=59 // pred_check
          %p479 = pneg %p180
        $region62: #{tpu_custom_call.1} parent=59 // pred_check_branch
          %481 = sbr.rel (%p479) target = $region64
        $region63: #{tpu_custom_call.1} parent=59 // pred_region
          %s482 = sand.u32 %s165, 1
          %s483 = scalar_lea.sflag [#allocation4], %s482
          %s484 = sand.u32 %s165, 1
          %s485 = smul.addr %s484, 16
          %s486 = scalar_lea.vmem [#allocation10], %s485
          %488 = dma.done %s483, 256
        $region64: #{tpu_custom_call.1} parent=59 // pred_fallthru
          _
      $region60: #{tpu_custom_call.1} parent=5 // pred_fallthru
        _
    $region6: #{tpu_custom_call.1} parent=1 // loop_footer
      %s24 = sadd.s32 1, %s20
    $region7: #{tpu_custom_call.1} parent=1 // loop_footer_branch
      %19 = sbr.rel target = $region3
    $region8: #{tpu_custom_call.1} parent=1 // loop_exit
      _
    %489 = vsyncpa [#allocation3], 1
    %s490 = scalar_lea.sflag [#allocation3], 1
    %491 = vsyncpa %s490, 1
    %492 = vsyncpa [#allocation6], 1
    %s493 = scalar_lea.sflag [#allocation6], 1
    %494 = vsyncpa %s493, 1
    %495 = vsyncpa [#allocation9], 1
    %496 = vsyncpa [#allocation4], 1
    %s497 = scalar_lea.sflag [#allocation4], 1
    %498 = vsyncpa %s497, 1

</llo_original>
